<compile_context>
chip_gen: v7x
topology: tpu7x:2x2x1
jax: 0.10.0
libtpu: 0.0.40
codegen_flags: <defaults>
</compile_context>

<pallas_src>
import jax
import jax.numpy as jnp
from jax.experimental import pallas as pl
from jax.experimental.pallas import tpu as pltpu


def _elementwise_kernel(x_ref, o_ref):
    x = x_ref[...]
    if jnp.issubdtype(x.dtype, jnp.floating):
        # Step-by-step in the native float dtype (bf16/f16/f32): matches the
        # per-op rounding of the PyTorch reference and avoids an f32 round-trip
        # on chips with native low-precision VALUs.
        o_ref[...] = (((x + 2) - 1) * 3 / 4).astype(o_ref.dtype)
    else:
        # Exact integer arithmetic for +2, -1, *3 (as PyTorch does), then the
        # final true-division promotes to float32.
        y = ((x.astype(jnp.int32) + 2) - 1) * 3
        o_ref[...] = (y.astype(jnp.float32) / 4.0).astype(o_ref.dtype)


def _sublane_multiple(dtype):
    itemsize = jnp.dtype(dtype).itemsize
    if itemsize >= 4:
        return 8
    if itemsize == 2:
        return 16
    return 32


def _tail_elementwise(x_flat, out_dtype):
    # < lane elements — computed in plain JAX so the non-divisible fallback
    # never materializes a full-array pad + slice pass over HBM.
    if jnp.issubdtype(x_flat.dtype, jnp.floating):
        return (((x_flat + 2) - 1) * 3 / 4).astype(out_dtype)
    y = ((x_flat.astype(jnp.int32) + 2) - 1) * 3
    return (y.astype(jnp.float32) / 4.0).astype(out_dtype)


def _run_2d(x2d, out_dtype, target_block_bytes):
    """Run the elementwise kernel over a (rows, lane) view."""
    rows, lane = x2d.shape
    in_item = jnp.dtype(x2d.dtype).itemsize
    out_item = jnp.dtype(out_dtype).itemsize
    combined = in_item + out_item  # size blocks on input + promoted output
    sub = max(_sublane_multiple(x2d.dtype), _sublane_multiple(out_dtype))

    # Pick block_rows so one grid step moves ~target_block_bytes (in + out).
    # The double-buffered footprint is ~2x that, comfortably under the scoped
    # VMEM limit we request below (32 MiB) on v5e / v6e / v7x.
    block_rows = max(sub, (target_block_bytes // (lane * combined)) // sub * sub)
    if block_rows >= rows:
        if rows >= 2 * sub:
            # Never collapse to a single grid step when the work can be split:
            # with dimension_semantics=('parallel',) this lets v7x's two
            # TensorCores both stream (and costs one extra ~0.35us step).
            block_rows = pl.cdiv(pl.cdiv(rows, 2), sub) * sub
        else:
            block_rows = rows  # full-extent block: always a legal block shape

    grid = (pl.cdiv(rows, block_rows),)

    cost = pl.CostEstimate(
        flops=4 * rows * lane,
        transcendentals=0,
        bytes_accessed=rows * lane * combined,
    )

    return pl.pallas_call(
        _elementwise_kernel,
        out_shape=jax.ShapeDtypeStruct((rows, lane), out_dtype),
        grid=grid,
        in_specs=[pl.BlockSpec((block_rows, lane), lambda i: (i, 0))],
        out_specs=pl.BlockSpec((block_rows, lane), lambda i: (i, 0)),
        compiler_params=pltpu.CompilerParams(
            dimension_semantics=("parallel",),
            vmem_limit_bytes=32 << 20,
        ),
        cost_estimate=cost,
    )(x2d)


def pt_module_forward(x, *, target_block_bytes=8 << 20):
    """Pallas equivalent of PtModule.forward: ((x + 2) - 1) * 3 / 4."""
    orig_shape = x.shape
    in_dtype = x.dtype
    # PyTorch true division promotes integer inputs to float; floats keep dtype.
    out_dtype = in_dtype if jnp.issubdtype(in_dtype, jnp.floating) else jnp.float32

    flat = x.reshape(-1)
    n = flat.shape[0]
    if n == 0:
        return flat.astype(out_dtype).reshape(orig_shape)

    # Lane-dense re-chunking: pick the largest lane (multiple of 128, <= 8192)
    # that divides N exactly so no padded copy is ever materialized.
    lane = None
    for k in range(64, 0, -1):
        cand = 128 * k
        if n % cand == 0:
            lane = cand
            break

    if lane is not None:
        out_flat = _run_2d(flat.reshape(n // lane, lane), out_dtype,
                           target_block_bytes).reshape(-1)
    elif n >= 128:
        # Non-divisible fallback: kernel on the divisible bulk, tiny (< lane)
        # tail in plain JAX — avoids a full-array pad + slice round trip.
        lane = 1024 if n >= 1024 else 128
        n_bulk = (n // lane) * lane
        bulk = _run_2d(flat[:n_bulk].reshape(n_bulk // lane, lane), out_dtype,
                       target_block_bytes).reshape(-1)
        tail = _tail_elementwise(flat[n_bulk:], out_dtype)
        out_flat = jnp.concatenate([bulk, tail])
    else:
        # Tiny array: a single full-extent (1, n) block is always legal.
        out_flat = _run_2d(flat.reshape(1, n), out_dtype,
                           target_block_bytes).reshape(-1)

    return out_flat.reshape(orig_shape)


if __name__ == "__main__":
    key = jax.random.PRNGKey(0)
    x = jax.random.normal(key, (2, 4, 16, 16), dtype=jnp.float32)

    out = pt_module_forward(x)
    out = jax.block_until_ready(out)

    # Reference check in plain JAX.
    ref = ((x + 2.0) - 1.0) * 3.0 / 4.0
    assert out.shape == x.shape and out.dtype == x.dtype
    assert jnp.allclose(out, ref, atol=1e-6, rtol=1e-6)

    print("KERNEL_OK")
</pallas_src>

<mosaic_0001>
module attributes {stable_mosaic.version = 11 : i64} {
  func.func @_elementwise_kernel(%arg0: i32, %arg1: memref<1x2048xf32, #tpu.memory_space<vmem>>, %arg2: memref<1x2048xf32, #tpu.memory_space<vmem>>) attributes {dimension_semantics = [#tpu.dimension_semantics<parallel>], iteration_bounds = array<i64: 1>, scalar_prefetch = 0 : i64, scratch_operands = 0 : i64, tpu.core_type = #tpu.core_type<tc>, window_params = [{transform_indices = @transform_0, window_bounds = array<i64: 1, 2048>}, {transform_indices = @transform_1, window_bounds = array<i64: 1, 2048>}]} {
    %c0 = arith.constant 0 : index
    %c0_0 = arith.constant 0 : index
    %0 = vector.load %arg1[%c0, %c0_0] : memref<1x2048xf32, #tpu.memory_space<vmem>>, vector<1x2048xf32>
    %cst = arith.constant 2.000000e+00 : f32
    %1 = vector.broadcast %cst : f32 to vector<1x2048xf32>
    %2 = arith.addf %0, %1 : vector<1x2048xf32>
    %cst_1 = arith.constant 1.000000e+00 : f32
    %3 = vector.broadcast %cst_1 : f32 to vector<1x2048xf32>
    %4 = arith.subf %2, %3 : vector<1x2048xf32>
    %cst_2 = arith.constant 3.000000e+00 : f32
    %5 = vector.broadcast %cst_2 : f32 to vector<1x2048xf32>
    %6 = arith.mulf %4, %5 : vector<1x2048xf32>
    %cst_3 = arith.constant 4.000000e+00 : f32
    %7 = vector.broadcast %cst_3 : f32 to vector<1x2048xf32>
    %8 = arith.divf %6, %7 : vector<1x2048xf32>
    %c0_4 = arith.constant 0 : index
    %c0_5 = arith.constant 0 : index
    %9 = vector.load %arg2[%c0_4, %c0_5] : memref<1x2048xf32, #tpu.memory_space<vmem>>, vector<1x2048xf32>
    tpu.vector_store %arg2[%c0_4, %c0_5], %8 {strides = array<i32>} : memref<1x2048xf32, #tpu.memory_space<vmem>>, vector<1x2048xf32>,
    return
  }
  func.func @transform_0(%arg0: i32) -> (i32, i32) {
    %c0_i32 = arith.constant 0 : i32
    %c0_i32_0 = arith.constant 0 : i32
    return %arg0, %c0_i32 : i32, i32
  }
  func.func @transform_1(%arg0: i32) -> (i32, i32) {
    %c0_i32 = arith.constant 0 : i32
    %c0_i32_0 = arith.constant 0 : i32
    return %arg0, %c0_i32 : i32, i32
  }
}

</mosaic_0001>

<llo_original>
// kernel: tpu_custom_call.1
$region0: #{tpu_custom_call.1}
  #allocation0 [shape = 'u32[]', space=smem, size = 0x4, offset = 0x4, fixed_abs, tag = 'smem constant byte address 0x4 - core index']
  #allocation1 [shape = 'u32[144,128]{1,0:T(1,128)}', space=vmem, size = 0x12000, scoped, tag = 'internal scratch']
  %s0 = inlined_call_operand.hbm [shape: f32[1,2048], index: 0, kind: input, shape index: {}]
  %s1 = inlined_call_operand.hbm [shape: f32[1,2048], index: 1, kind: output, shape index: {}]
  %s2 = sld [smem:[#allocation0]]
  $region18: #{tpu_custom_call.1} parent=0
    _
  %s4 = ssub.s32 1, %s2
  %s5 = scalar_select 0, %s4, %s2
  $region1: #{tpu_custom_call.1} parent=0
    #allocation2 [shape = 'u8[8192]{0}', space=vmem, size = 0x2000, scoped, tag = 'input window, operand 0, single buffered']
    #allocation3 [shape = 's32[1]{0}', space=sflag, size = 0x4, scoped, tag = 'scoped memory for tpu_custom_call.1']
    #allocation4 [shape = 's32[1]{0}', space=sflag, size = 0x4, scoped, tag = 'scoped memory for tpu_custom_call.1']
    #allocation5 [shape = 'u8[8192]{0}', space=vmem, size = 0x2000, scoped, tag = 'output window, operand 0, single buffered']
    %6 = vsyncpa [#allocation3], 0
    %7 = vsyncpa [#allocation4], 0
    // Predicated region
    $region2: #{tpu_custom_call.1} parent=1 // pred_check
      _
    $region3: #{tpu_custom_call.1} parent=1 // pred_check_branch
      %9 = sbr.rel (0) target = $region5
    $region4: #{tpu_custom_call.1} parent=1 // pred_region
      %s11 = ssub.s32 256, 256
      %12 = vsyncadd [#allocation3], %s11
      %s14 = sshll.u32 [#allocation2], 4
      %s15 = int_to_ptr.vmem [resolvable:$true] %s14
      %17 = dma.hbm_to_vmem [thread:$0]  %s0, 256, %s15, [#allocation3]
    $region5: #{tpu_custom_call.1} parent=1 // pred_fallthru
      _
    // Predicated region
    $region6: #{tpu_custom_call.1} parent=1 // pred_check
      _
    $region7: #{tpu_custom_call.1} parent=1 // pred_check_branch
      %19 = sbr.rel (0) target = $region9
    $region8: #{tpu_custom_call.1} parent=1 // pred_region
      %20 = dma.done [#allocation3], 256
    $region9: #{tpu_custom_call.1} parent=1 // pred_fallthru
      _
    %v21 = vld [vmem:[#allocation2] sm:$0xff]
    %v22 = vld [vmem:[#allocation2 + $0x8] sm:$0xff]
    %v23 = vadd.f32 %v21, 2.0
    %v24 = vadd.f32 %v22, 2.0
    %v25 = vsub.f32 %v23, 1.0
    %v26 = vsub.f32 %v24, 1.0
    %v27 = vmul.f32 %v25, 3.0
    %v28 = vmul.f32 %v26, 3.0
    %v29 = vrcp.pop 4.0
    %v30 = vmul.f32 %v27, %v29
    %v31 = vmul.f32 %v28, %v29
    %32 = vst [vmem:[#allocation5] sm:$0xff] %v30
    %33 = vst [vmem:[#allocation5 + $0x8] sm:$0xff] %v31
    // Predicated region
    $region10: #{tpu_custom_call.1} parent=1 // pred_check
      _
    $region11: #{tpu_custom_call.1} parent=1 // pred_check_branch
      %35 = sbr.rel (0) target = $region13
    $region12: #{tpu_custom_call.1} parent=1 // pred_region
      %s37 = ssub.s32 256, 256
      %38 = vsyncadd [#allocation4], %s37
      %s40 = sshll.u32 [#allocation5], 4
      %s41 = int_to_ptr.vmem [resolvable:$true] %s40
      %43 = dma.vmem_to_hbm [thread:$0]  %s41, 256, %s1, [#allocation4]
    $region13: #{tpu_custom_call.1} parent=1 // pred_fallthru
      _
    // Predicated region
    $region14: #{tpu_custom_call.1} parent=1 // pred_check
      _
    $region15: #{tpu_custom_call.1} parent=1 // pred_check_branch
      %45 = sbr.rel (0) target = $region17
    $region16: #{tpu_custom_call.1} parent=1 // pred_region
      %46 = dma.done [#allocation4], 256
    $region17: #{tpu_custom_call.1} parent=1 // pred_fallthru
      _
    %47 = vsyncpa [#allocation3], 1
    %48 = vsyncpa [#allocation4], 1

</llo_original>
